<compile_context>
chip_gen: v5e
topology: v5e:2x2
jax: 0.10.0
libtpu: 0.0.40
codegen_flags: <defaults>
</compile_context>

<pallas_src>
import functools

import jax
import jax.numpy as jnp
from jax.experimental import pallas as pl
from jax.experimental.pallas import tpu as pltpu

LANE = 128


def _round_up(n, m):
    return ((n + m - 1) // m) * m


# -------------------------- Pallas kernel (hot path) --------------------------
def gru_kernel(x_ref, wih_ref, bih_ref, whh_ref, bhh_ref, wl_ref, bl_ref,
               o_ref, *, seq_len, batch_tile, hidden):
    T, TB, H = seq_len, batch_tile, hidden

    # ---- 1) fused input projection for every timestep of this batch tile ----
    # x block is laid out time-major inside the tile: row = t*TB + local_b.
    gx = (jnp.dot(x_ref[...], wih_ref[...], preferred_element_type=jnp.float32)
          + bih_ref[...])                                      # [T*TB, 3H]

    whh = whh_ref[...]                                         # [H, 3H]
    bhh = bhh_ref[...]                                         # [1, 3H]

    # ---- 2) sequential GRU recurrence over time (unavoidably serial) --------
    # T is small & static -> fully unrolled with static (sublane-aligned)
    # slices; hidden states stay register-resident.  For long sequences,
    # switch to lax.fori_loop + pl.ds into a VMEM scratch.
    h = jnp.zeros((TB, H), jnp.float32)                        # h_0 = 0
    hs = []
    for t in range(T):
        gx_t = gx[t * TB:(t + 1) * TB, :]                      # [TB, 3H]
        gh = jnp.dot(h, whh, preferred_element_type=jnp.float32) + bhh
        r = jax.nn.sigmoid(gx_t[:, 0:H] + gh[:, 0:H])
        z = jax.nn.sigmoid(gx_t[:, H:2 * H] + gh[:, H:2 * H])
        n = jnp.tanh(gx_t[:, 2 * H:3 * H] + r * gh[:, 2 * H:3 * H])
        h = (1.0 - z) * n + z * h
        hs.append(h)

    # ---- 3) ReLU + output projection: one MXU pass, lane-dense (128) store --
    h_all = jnp.maximum(jnp.concatenate(hs, axis=0), 0.0)      # [T*TB, H]
    o_ref[...] = (
        jnp.dot(h_all, wl_ref[...], preferred_element_type=jnp.float32)
        + bl_ref[...]).astype(o_ref.dtype)


# ------------------------------ JAX wrapper ------------------------------
def gru_forward(x, edge_index, params, *, batch_tile=8):
    """x: [B, T, F_in] -> [B, T, out].  edge_index is unused (as in torch)."""
    del edge_index  # the torch module ignores it on the GRU path
    B, T, F_in = x.shape
    w_ih_t, b_ih = params["w_ih_t"], params["b_ih"]      # [F_in,3H], [1,3H]
    w_hh_t, b_hh = params["w_hh_t"], params["b_hh"]      # [H,3H],   [1,3H]
    w_lin_t, b_lin = params["w_lin_t"], params["b_lin"]  # [H,OUT],  [1,OUT]
    H = w_hh_t.shape[0]
    out_ch = w_lin_t.shape[1]

    # Pad the batch up to a tile multiple (zeros), sliced off afterwards.
    B_pad = _round_up(B, batch_tile)
    if B_pad != B:
        x = jnp.concatenate(
            [x, jnp.zeros((B_pad - B, T, F_in), x.dtype)], axis=0)
    nb = B_pad // batch_tile
    rows = T * batch_tile

    # Lane-dense output: pad OUT up to a full 128-lane width, slice afterwards.
    out_pad = _round_up(out_ch, LANE)
    wl_pad = jnp.zeros((H, out_pad), jnp.float32).at[:, :out_ch].set(w_lin_t)
    bl_pad = jnp.zeros((1, out_pad), jnp.float32).at[:, :out_ch].set(b_lin)

    # Re-lay x so each batch tile is a contiguous, time-major 2-D slab:
    #   [B,T,F] -> [nb, TB, T, F] -> [nb, T, TB, F] -> [nb*T*TB, F]
    x2d = (x.astype(jnp.float32)
             .reshape(nb, batch_tile, T, F_in)
             .transpose(0, 2, 1, 3)
             .reshape(nb * rows, F_in))

    kernel = functools.partial(gru_kernel, seq_len=T, batch_tile=batch_tile,
                               hidden=H)

    out2d = pl.pallas_call(
        kernel,
        out_shape=jax.ShapeDtypeStruct((nb * rows, out_pad), jnp.float32),
        grid_spec=pltpu.PrefetchScalarGridSpec(
            num_scalar_prefetch=0,
            grid=(nb,),
            in_specs=[
                pl.BlockSpec((rows, F_in), lambda i: (i, 0)),     # x tile
                pl.BlockSpec((F_in, 3 * H), lambda i: (0, 0)),    # W_ih^T
                pl.BlockSpec((1, 3 * H), lambda i: (0, 0)),       # b_ih
                pl.BlockSpec((H, 3 * H), lambda i: (0, 0)),       # W_hh^T
                pl.BlockSpec((1, 3 * H), lambda i: (0, 0)),       # b_hh
                pl.BlockSpec((H, out_pad), lambda i: (0, 0)),     # W_lin (pad)
                pl.BlockSpec((1, out_pad), lambda i: (0, 0)),     # b_lin (pad)
            ],
            out_specs=pl.BlockSpec((rows, out_pad), lambda i: (i, 0)),
            scratch_shapes=[]),
        compiler_params=pltpu.CompilerParams(
            dimension_semantics=("parallel",),
            vmem_limit_bytes=32 * 1024 * 1024),
    )(x2d, w_ih_t, b_ih, w_hh_t, b_hh, wl_pad, bl_pad)

    # Undo the tile layout, drop the lane padding and the batch padding.
    out = (out2d.reshape(nb, T, batch_tile, out_pad)
                 .transpose(0, 2, 1, 3)
                 .reshape(B_pad, T, out_pad)[:B, :, :out_ch])
    return out


# ------------------------------ pure-JAX reference ------------------------------
def gru_reference(x, params):
    w_ih_t, b_ih = params["w_ih_t"], params["b_ih"]
    w_hh_t, b_hh = params["w_hh_t"], params["b_hh"]
    H = w_hh_t.shape[0]

    def step(h, x_t):
        gx = x_t @ w_ih_t + b_ih
        gh = h @ w_hh_t + b_hh
        r = jax.nn.sigmoid(gx[:, :H] + gh[:, :H])
        z = jax.nn.sigmoid(gx[:, H:2 * H] + gh[:, H:2 * H])
        n = jnp.tanh(gx[:, 2 * H:] + r * gh[:, 2 * H:])
        h_new = (1.0 - z) * n + z * h
        return h_new, h_new

    B = x.shape[0]
    h0 = jnp.zeros((B, H), jnp.float32)
    _, hs = jax.lax.scan(step, h0, jnp.transpose(x, (1, 0, 2)))
    hs = jnp.transpose(hs, (1, 0, 2))                      # [B, T, H]
    return jnp.maximum(hs, 0.0) @ params["w_lin_t"] + params["b_lin"]


# ------------------------------ main ------------------------------
if __name__ == "__main__":
    B, T, F_IN, H, OUT = 16, 8, 16, 32, 8     # batch, seq, in, hidden, out

    key = jax.random.PRNGKey(0)
    kx, k1, k2, k3, k4, k5, k6 = jax.random.split(key, 7)

    x = jax.random.normal(kx, (B, T, F_IN), dtype=jnp.float32)
    # dummy edge_index to mirror forward(x, edge_index); it is unused.
    edge_index = jnp.stack([jnp.arange(B, dtype=jnp.int32),
                            jnp.roll(jnp.arange(B, dtype=jnp.int32), 1)])

    def uniform(k, shape, bound):
        return jax.random.uniform(k, shape, jnp.float32, -bound, bound)

    bound = 1.0 / float(jnp.sqrt(jnp.float32(H)))   # PyTorch default init range
    params = {
        "w_ih_t": uniform(k1, (F_IN, 3 * H), bound),   # (W_ir|W_iz|W_in)^T
        "b_ih": uniform(k2, (1, 3 * H), bound),
        "w_hh_t": uniform(k3, (H, 3 * H), bound),      # (W_hr|W_hz|W_hn)^T
        "b_hh": uniform(k4, (1, 3 * H), bound),
        "w_lin_t": uniform(k5, (H, OUT), bound),       # linear weight^T
        "b_lin": uniform(k6, (1, OUT), bound),
    }

    out = gru_forward(x, edge_index, params, batch_tile=8)
    out = jax.block_until_ready(out)

    ref = gru_reference(x, params)
    assert out.shape == (B, T, OUT), out.shape
    assert jnp.allclose(out, ref, atol=2e-4, rtol=2e-4), float(
        jnp.max(jnp.abs(out - ref)))

    print("KERNEL_OK")
</pallas_src>

<mosaic_0001>
module attributes {stable_mosaic.version = 11 : i64} {
  func.func @gru_kernel(%arg0: i32, %arg1: memref<64x16xf32, #tpu.memory_space<vmem>>, %arg2: memref<16x96xf32, #tpu.memory_space<vmem>>, %arg3: memref<1x96xf32, #tpu.memory_space<vmem>>, %arg4: memref<32x96xf32, #tpu.memory_space<vmem>>, %arg5: memref<1x96xf32, #tpu.memory_space<vmem>>, %arg6: memref<32x128xf32, #tpu.memory_space<vmem>>, %arg7: memref<1x128xf32, #tpu.memory_space<vmem>>, %arg8: memref<64x128xf32, #tpu.memory_space<vmem>>) attributes {dimension_semantics = [#tpu.dimension_semantics<parallel>], iteration_bounds = array<i64: 2>, scalar_prefetch = 0 : i64, scratch_operands = 0 : i64, tpu.core_type = #tpu.core_type<tc>, window_params = [{transform_indices = @transform_0, window_bounds = array<i64: 64, 16>}, {pipeline_mode = #tpu.pipeline_mode<synchronous>, transform_indices = @transform_1, window_bounds = array<i64: 16, 96>}, {pipeline_mode = #tpu.pipeline_mode<synchronous>, transform_indices = @transform_2, window_bounds = array<i64: 1, 96>}, {pipeline_mode = #tpu.pipeline_mode<synchronous>, transform_indices = @transform_3, window_bounds = array<i64: 32, 96>}, {pipeline_mode = #tpu.pipeline_mode<synchronous>, transform_indices = @transform_4, window_bounds = array<i64: 1, 96>}, {pipeline_mode = #tpu.pipeline_mode<synchronous>, transform_indices = @transform_5, window_bounds = array<i64: 32, 128>}, {pipeline_mode = #tpu.pipeline_mode<synchronous>, transform_indices = @transform_6, window_bounds = array<i64: 1, 128>}, {transform_indices = @transform_7, window_bounds = array<i64: 64, 128>}]} {
    %c0 = arith.constant 0 : index
    %c0_0 = arith.constant 0 : index
    %0 = vector.load %arg1[%c0, %c0_0] : memref<64x16xf32, #tpu.memory_space<vmem>>, vector<64x16xf32>
    %c0_1 = arith.constant 0 : index
    %c0_2 = arith.constant 0 : index
    %1 = vector.load %arg2[%c0_1, %c0_2] : memref<16x96xf32, #tpu.memory_space<vmem>>, vector<16x96xf32>
    %cst = arith.constant dense<0.000000e+00> : vector<64x96xf32>
    %2 = tpu.matmul %0, %1, %cst {dimension_numbers = #tpu.dot_dimension_numbers<[1], [0], [0], [1], [0, 0, 1, 1], [], []>} : vector<64x16xf32>, vector<16x96xf32>, vector<64x96xf32> -> vector<64x96xf32>
    %c0_3 = arith.constant 0 : index
    %c0_4 = arith.constant 0 : index
    %3 = vector.load %arg3[%c0_3, %c0_4] : memref<1x96xf32, #tpu.memory_space<vmem>>, vector<1x96xf32>
    %4 = vector.broadcast %3 : vector<1x96xf32> to vector<64x96xf32>
    %5 = arith.addf %2, %4 : vector<64x96xf32>
    %c0_5 = arith.constant 0 : index
    %c0_6 = arith.constant 0 : index
    %6 = vector.load %arg4[%c0_5, %c0_6] : memref<32x96xf32, #tpu.memory_space<vmem>>, vector<32x96xf32>
    %c0_7 = arith.constant 0 : index
    %c0_8 = arith.constant 0 : index
    %7 = vector.load %arg5[%c0_7, %c0_8] : memref<1x96xf32, #tpu.memory_space<vmem>>, vector<1x96xf32>
    %cst_9 = arith.constant 0.000000e+00 : f32
    %8 = vector.broadcast %cst_9 : f32 to vector<8x32xf32>
    %9 = vector.extract_strided_slice %5 {offsets = [0, 0], sizes = [8, 96], strides = [1, 1]} : vector<64x96xf32> to vector<8x96xf32>
    %cst_10 = arith.constant dense<0.000000e+00> : vector<8x96xf32>
    %10 = tpu.matmul %8, %6, %cst_10 {dimension_numbers = #tpu.dot_dimension_numbers<[1], [0], [0], [1], [0, 0, 1, 1], [], []>} : vector<8x32xf32>, vector<32x96xf32>, vector<8x96xf32> -> vector<8x96xf32>
    %11 = vector.broadcast %7 : vector<1x96xf32> to vector<8x96xf32>
    %12 = arith.addf %10, %11 : vector<8x96xf32>
    %13 = vector.extract_strided_slice %9 {offsets = [0, 0], sizes = [8, 32], strides = [1, 1]} : vector<8x96xf32> to vector<8x32xf32>
    %14 = vector.extract_strided_slice %12 {offsets = [0, 0], sizes = [8, 32], strides = [1, 1]} : vector<8x96xf32> to vector<8x32xf32>
    %15 = arith.addf %13, %14 : vector<8x32xf32>
    %16 = arith.negf %15 : vector<8x32xf32>
    %17 = math.exp %16 : vector<8x32xf32>
    %cst_11 = arith.constant 1.000000e+00 : f32
    %18 = vector.broadcast %cst_11 : f32 to vector<8x32xf32>
    %19 = arith.addf %18, %17 : vector<8x32xf32>
    %20 = arith.divf %18, %19 : vector<8x32xf32>
    %21 = vector.extract_strided_slice %9 {offsets = [0, 32], sizes = [8, 32], strides = [1, 1]} : vector<8x96xf32> to vector<8x32xf32>
    %22 = vector.extract_strided_slice %12 {offsets = [0, 32], sizes = [8, 32], strides = [1, 1]} : vector<8x96xf32> to vector<8x32xf32>
    %23 = arith.addf %21, %22 : vector<8x32xf32>
    %24 = arith.negf %23 : vector<8x32xf32>
    %25 = math.exp %24 : vector<8x32xf32>
    %cst_12 = arith.constant 1.000000e+00 : f32
    %26 = vector.broadcast %cst_12 : f32 to vector<8x32xf32>
    %27 = arith.addf %26, %25 : vector<8x32xf32>
    %28 = arith.divf %26, %27 : vector<8x32xf32>
    %29 = vector.extract_strided_slice %9 {offsets = [0, 64], sizes = [8, 32], strides = [1, 1]} : vector<8x96xf32> to vector<8x32xf32>
    %30 = vector.extract_strided_slice %12 {offsets = [0, 64], sizes = [8, 32], strides = [1, 1]} : vector<8x96xf32> to vector<8x32xf32>
    %31 = arith.mulf %20, %30 : vector<8x32xf32>
    %32 = arith.addf %29, %31 : vector<8x32xf32>
    %33 = math.tanh %32 : vector<8x32xf32>
    %cst_13 = arith.constant 1.000000e+00 : f32
    %34 = vector.broadcast %cst_13 : f32 to vector<8x32xf32>
    %35 = arith.subf %34, %28 : vector<8x32xf32>
    %36 = arith.mulf %35, %33 : vector<8x32xf32>
    %37 = arith.mulf %28, %8 : vector<8x32xf32>
    %38 = arith.addf %36, %37 : vector<8x32xf32>
    %39 = vector.extract_strided_slice %5 {offsets = [8, 0], sizes = [8, 96], strides = [1, 1]} : vector<64x96xf32> to vector<8x96xf32>
    %cst_14 = arith.constant dense<0.000000e+00> : vector<8x96xf32>
    %40 = tpu.matmul %38, %6, %cst_14 {dimension_numbers = #tpu.dot_dimension_numbers<[1], [0], [0], [1], [0, 0, 1, 1], [], []>} : vector<8x32xf32>, vector<32x96xf32>, vector<8x96xf32> -> vector<8x96xf32>
    %41 = vector.broadcast %7 : vector<1x96xf32> to vector<8x96xf32>
    %42 = arith.addf %40, %41 : vector<8x96xf32>
    %43 = vector.extract_strided_slice %39 {offsets = [0, 0], sizes = [8, 32], strides = [1, 1]} : vector<8x96xf32> to vector<8x32xf32>
    %44 = vector.extract_strided_slice %42 {offsets = [0, 0], sizes = [8, 32], strides = [1, 1]} : vector<8x96xf32> to vector<8x32xf32>
    %45 = arith.addf %43, %44 : vector<8x32xf32>
    %46 = arith.negf %45 : vector<8x32xf32>
    %47 = math.exp %46 : vector<8x32xf32>
    %cst_15 = arith.constant 1.000000e+00 : f32
    %48 = vector.broadcast %cst_15 : f32 to vector<8x32xf32>
    %49 = arith.addf %48, %47 : vector<8x32xf32>
    %50 = arith.divf %48, %49 : vector<8x32xf32>
    %51 = vector.extract_strided_slice %39 {offsets = [0, 32], sizes = [8, 32], strides = [1, 1]} : vector<8x96xf32> to vector<8x32xf32>
    %52 = vector.extract_strided_slice %42 {offsets = [0, 32], sizes = [8, 32], strides = [1, 1]} : vector<8x96xf32> to vector<8x32xf32>
    %53 = arith.addf %51, %52 : vector<8x32xf32>
    %54 = arith.negf %53 : vector<8x32xf32>
    %55 = math.exp %54 : vector<8x32xf32>
    %cst_16 = arith.constant 1.000000e+00 : f32
    %56 = vector.broadcast %cst_16 : f32 to vector<8x32xf32>
    %57 = arith.addf %56, %55 : vector<8x32xf32>
    %58 = arith.divf %56, %57 : vector<8x32xf32>
    %59 = vector.extract_strided_slice %39 {offsets = [0, 64], sizes = [8, 32], strides = [1, 1]} : vector<8x96xf32> to vector<8x32xf32>
    %60 = vector.extract_strided_slice %42 {offsets = [0, 64], sizes = [8, 32], strides = [1, 1]} : vector<8x96xf32> to vector<8x32xf32>
    %61 = arith.mulf %50, %60 : vector<8x32xf32>
    %62 = arith.addf %59, %61 : vector<8x32xf32>
    %63 = math.tanh %62 : vector<8x32xf32>
    %cst_17 = arith.constant 1.000000e+00 : f32
    %64 = vector.broadcast %cst_17 : f32 to vector<8x32xf32>
    %65 = arith.subf %64, %58 : vector<8x32xf32>
    %66 = arith.mulf %65, %63 : vector<8x32xf32>
    %67 = arith.mulf %58, %38 : vector<8x32xf32>
    %68 = arith.addf %66, %67 : vector<8x32xf32>
    %69 = vector.extract_strided_slice %5 {offsets = [16, 0], sizes = [8, 96], strides = [1, 1]} : vector<64x96xf32> to vector<8x96xf32>
    %cst_18 = arith.constant dense<0.000000e+00> : vector<8x96xf32>
    %70 = tpu.matmul %68, %6, %cst_18 {dimension_numbers = #tpu.dot_dimension_numbers<[1], [0], [0], [1], [0, 0, 1, 1], [], []>} : vector<8x32xf32>, vector<32x96xf32>, vector<8x96xf32> -> vector<8x96xf32>
    %71 = vector.broadcast %7 : vector<1x96xf32> to vector<8x96xf32>
    %72 = arith.addf %70, %71 : vector<8x96xf32>
    %73 = vector.extract_strided_slice %69 {offsets = [0, 0], sizes = [8, 32], strides = [1, 1]} : vector<8x96xf32> to vector<8x32xf32>
    %74 = vector.extract_strided_slice %72 {offsets = [0, 0], sizes = [8, 32], strides = [1, 1]} : vector<8x96xf32> to vector<8x32xf32>
    %75 = arith.addf %73, %74 : vector<8x32xf32>
    %76 = arith.negf %75 : vector<8x32xf32>
    %77 = math.exp %76 : vector<8x32xf32>
    %cst_19 = arith.constant 1.000000e+00 : f32
    %78 = vector.broadcast %cst_19 : f32 to vector<8x32xf32>
    %79 = arith.addf %78, %77 : vector<8x32xf32>
    %80 = arith.divf %78, %79 : vector<8x32xf32>
    %81 = vector.extract_strided_slice %69 {offsets = [0, 32], sizes = [8, 32], strides = [1, 1]} : vector<8x96xf32> to vector<8x32xf32>
    %82 = vector.extract_strided_slice %72 {offsets = [0, 32], sizes = [8, 32], strides = [1, 1]} : vector<8x96xf32> to vector<8x32xf32>
    %83 = arith.addf %81, %82 : vector<8x32xf32>
    %84 = arith.negf %83 : vector<8x32xf32>
    %85 = math.exp %84 : vector<8x32xf32>
    %cst_20 = arith.constant 1.000000e+00 : f32
    %86 = vector.broadcast %cst_20 : f32 to vector<8x32xf32>
    %87 = arith.addf %86, %85 : vector<8x32xf32>
    %88 = arith.divf %86, %87 : vector<8x32xf32>
    %89 = vector.extract_strided_slice %69 {offsets = [0, 64], sizes = [8, 32], strides = [1, 1]} : vector<8x96xf32> to vector<8x32xf32>
    %90 = vector.extract_strided_slice %72 {offsets = [0, 64], sizes = [8, 32], strides = [1, 1]} : vector<8x96xf32> to vector<8x32xf32>
    %91 = arith.mulf %80, %90 : vector<8x32xf32>
    %92 = arith.addf %89, %91 : vector<8x32xf32>
    %93 = math.tanh %92 : vector<8x32xf32>
    %cst_21 = arith.constant 1.000000e+00 : f32
    %94 = vector.broadcast %cst_21 : f32 to vector<8x32xf32>
    %95 = arith.subf %94, %88 : vector<8x32xf32>
    %96 = arith.mulf %95, %93 : vector<8x32xf32>
    %97 = arith.mulf %88, %68 : vector<8x32xf32>
    %98 = arith.addf %96, %97 : vector<8x32xf32>
    %99 = vector.extract_strided_slice %5 {offsets = [24, 0], sizes = [8, 96], strides = [1, 1]} : vector<64x96xf32> to vector<8x96xf32>
    %cst_22 = arith.constant dense<0.000000e+00> : vector<8x96xf32>
    %100 = tpu.matmul %98, %6, %cst_22 {dimension_numbers = #tpu.dot_dimension_numbers<[1], [0], [0], [1], [0, 0, 1, 1], [], []>} : vector<8x32xf32>, vector<32x96xf32>, vector<8x96xf32> -> vector<8x96xf32>
    %101 = vector.broadcast %7 : vector<1x96xf32> to vector<8x96xf32>
    %102 = arith.addf %100, %101 : vector<8x96xf32>
    %103 = vector.extract_strided_slice %99 {offsets = [0, 0], sizes = [8, 32], strides = [1, 1]} : vector<8x96xf32> to vector<8x32xf32>
    %104 = vector.extract_strided_slice %102 {offsets = [0, 0], sizes = [8, 32], strides = [1, 1]} : vector<8x96xf32> to vector<8x32xf32>
    %105 = arith.addf %103, %104 : vector<8x32xf32>
    %106 = arith.negf %105 : vector<8x32xf32>
    %107 = math.exp %106 : vector<8x32xf32>
    %cst_23 = arith.constant 1.000000e+00 : f32
    %108 = vector.broadcast %cst_23 : f32 to vector<8x32xf32>
    %109 = arith.addf %108, %107 : vector<8x32xf32>
    %110 = arith.divf %108, %109 : vector<8x32xf32>
    %111 = vector.extract_strided_slice %99 {offsets = [0, 32], sizes = [8, 32], strides = [1, 1]} : vector<8x96xf32> to vector<8x32xf32>
    %112 = vector.extract_strided_slice %102 {offsets = [0, 32], sizes = [8, 32], strides = [1, 1]} : vector<8x96xf32> to vector<8x32xf32>
    %113 = arith.addf %111, %112 : vector<8x32xf32>
    %114 = arith.negf %113 : vector<8x32xf32>
    %115 = math.exp %114 : vector<8x32xf32>
    %cst_24 = arith.constant 1.000000e+00 : f32
    %116 = vector.broadcast %cst_24 : f32 to vector<8x32xf32>
    %117 = arith.addf %116, %115 : vector<8x32xf32>
    %118 = arith.divf %116, %117 : vector<8x32xf32>
    %119 = vector.extract_strided_slice %99 {offsets = [0, 64], sizes = [8, 32], strides = [1, 1]} : vector<8x96xf32> to vector<8x32xf32>
    %120 = vector.extract_strided_slice %102 {offsets = [0, 64], sizes = [8, 32], strides = [1, 1]} : vector<8x96xf32> to vector<8x32xf32>
    %121 = arith.mulf %110, %120 : vector<8x32xf32>
    %122 = arith.addf %119, %121 : vector<8x32xf32>
    %123 = math.tanh %122 : vector<8x32xf32>
    %cst_25 = arith.constant 1.000000e+00 : f32
    %124 = vector.broadcast %cst_25 : f32 to vector<8x32xf32>
    %125 = arith.subf %124, %118 : vector<8x32xf32>
    %126 = arith.mulf %125, %123 : vector<8x32xf32>
    %127 = arith.mulf %118, %98 : vector<8x32xf32>
    %128 = arith.addf %126, %127 : vector<8x32xf32>
    %129 = vector.extract_strided_slice %5 {offsets = [32, 0], sizes = [8, 96], strides = [1, 1]} : vector<64x96xf32> to vector<8x96xf32>
    %cst_26 = arith.constant dense<0.000000e+00> : vector<8x96xf32>
    %130 = tpu.matmul %128, %6, %cst_26 {dimension_numbers = #tpu.dot_dimension_numbers<[1], [0], [0], [1], [0, 0, 1, 1], [], []>} : vector<8x32xf32>, vector<32x96xf32>, vector<8x96xf32> -> vector<8x96xf32>
    %131 = vector.broadcast %7 : vector<1x96xf32> to vector<8x96xf32>
    %132 = arith.addf %130, %131 : vector<8x96xf32>
    %133 = vector.extract_strided_slice %129 {offsets = [0, 0], sizes = [8, 32], strides = [1, 1]} : vector<8x96xf32> to vector<8x32xf32>
    %134 = vector.extract_strided_slice %132 {offsets = [0, 0], sizes = [8, 32], strides = [1, 1]} : vector<8x96xf32> to vector<8x32xf32>
    %135 = arith.addf %133, %134 : vector<8x32xf32>
    %136 = arith.negf %135 : vector<8x32xf32>
    %137 = math.exp %136 : vector<8x32xf32>
    %cst_27 = arith.constant 1.000000e+00 : f32
    %138 = vector.broadcast %cst_27 : f32 to vector<8x32xf32>
    %139 = arith.addf %138, %137 : vector<8x32xf32>
    %140 = arith.divf %138, %139 : vector<8x32xf32>
    %141 = vector.extract_strided_slice %129 {offsets = [0, 32], sizes = [8, 32], strides = [1, 1]} : vector<8x96xf32> to vector<8x32xf32>
    %142 = vector.extract_strided_slice %132 {offsets = [0, 32], sizes = [8, 32], strides = [1, 1]} : vector<8x96xf32> to vector<8x32xf32>
    %143 = arith.addf %141, %142 : vector<8x32xf32>
    %144 = arith.negf %143 : vector<8x32xf32>
    %145 = math.exp %144 : vector<8x32xf32>
    %cst_28 = arith.constant 1.000000e+00 : f32
    %146 = vector.broadcast %cst_28 : f32 to vector<8x32xf32>
    %147 = arith.addf %146, %145 : vector<8x32xf32>
    %148 = arith.divf %146, %147 : vector<8x32xf32>
    %149 = vector.extract_strided_slice %129 {offsets = [0, 64], sizes = [8, 32], strides = [1, 1]} : vector<8x96xf32> to vector<8x32xf32>
    %150 = vector.extract_strided_slice %132 {offsets = [0, 64], sizes = [8, 32], strides = [1, 1]} : vector<8x96xf32> to vector<8x32xf32>
    %151 = arith.mulf %140, %150 : vector<8x32xf32>
    %152 = arith.addf %149, %151 : vector<8x32xf32>
    %153 = math.tanh %152 : vector<8x32xf32>
    %cst_29 = arith.constant 1.000000e+00 : f32
    %154 = vector.broadcast %cst_29 : f32 to vector<8x32xf32>
    %155 = arith.subf %154, %148 : vector<8x32xf32>
    %156 = arith.mulf %155, %153 : vector<8x32xf32>
    %157 = arith.mulf %148, %128 : vector<8x32xf32>
    %158 = arith.addf %156, %157 : vector<8x32xf32>
    %159 = vector.extract_strided_slice %5 {offsets = [40, 0], sizes = [8, 96], strides = [1, 1]} : vector<64x96xf32> to vector<8x96xf32>
    %cst_30 = arith.constant dense<0.000000e+00> : vector<8x96xf32>
    %160 = tpu.matmul %158, %6, %cst_30 {dimension_numbers = #tpu.dot_dimension_numbers<[1], [0], [0], [1], [0, 0, 1, 1], [], []>} : vector<8x32xf32>, vector<32x96xf32>, vector<8x96xf32> -> vector<8x96xf32>
    %161 = vector.broadcast %7 : vector<1x96xf32> to vector<8x96xf32>
    %162 = arith.addf %160, %161 : vector<8x96xf32>
    %163 = vector.extract_strided_slice %159 {offsets = [0, 0], sizes = [8, 32], strides = [1, 1]} : vector<8x96xf32> to vector<8x32xf32>
    %164 = vector.extract_strided_slice %162 {offsets = [0, 0], sizes = [8, 32], strides = [1, 1]} : vector<8x96xf32> to vector<8x32xf32>
    %165 = arith.addf %163, %164 : vector<8x32xf32>
    %166 = arith.negf %165 : vector<8x32xf32>
    %167 = math.exp %166 : vector<8x32xf32>
    %cst_31 = arith.constant 1.000000e+00 : f32
    %168 = vector.broadcast %cst_31 : f32 to vector<8x32xf32>
    %169 = arith.addf %168, %167 : vector<8x32xf32>
    %170 = arith.divf %168, %169 : vector<8x32xf32>
    %171 = vector.extract_strided_slice %159 {offsets = [0, 32], sizes = [8, 32], strides = [1, 1]} : vector<8x96xf32> to vector<8x32xf32>
    %172 = vector.extract_strided_slice %162 {offsets = [0, 32], sizes = [8, 32], strides = [1, 1]} : vector<8x96xf32> to vector<8x32xf32>
    %173 = arith.addf %171, %172 : vector<8x32xf32>
    %174 = arith.negf %173 : vector<8x32xf32>
    %175 = math.exp %174 : vector<8x32xf32>
    %cst_32 = arith.constant 1.000000e+00 : f32
    %176 = vector.broadcast %cst_32 : f32 to vector<8x32xf32>
    %177 = arith.addf %176, %175 : vector<8x32xf32>
    %178 = arith.divf %176, %177 : vector<8x32xf32>
    %179 = vector.extract_strided_slice %159 {offsets = [0, 64], sizes = [8, 32], strides = [1, 1]} : vector<8x96xf32> to vector<8x32xf32>
    %180 = vector.extract_strided_slice %162 {offsets = [0, 64], sizes = [8, 32], strides = [1, 1]} : vector<8x96xf32> to vector<8x32xf32>
    %181 = arith.mulf %170, %180 : vector<8x32xf32>
    %182 = arith.addf %179, %181 : vector<8x32xf32>
    %183 = math.tanh %182 : vector<8x32xf32>
    %cst_33 = arith.constant 1.000000e+00 : f32
    %184 = vector.broadcast %cst_33 : f32 to vector<8x32xf32>
    %185 = arith.subf %184, %178 : vector<8x32xf32>
    %186 = arith.mulf %185, %183 : vector<8x32xf32>
    %187 = arith.mulf %178, %158 : vector<8x32xf32>
    %188 = arith.addf %186, %187 : vector<8x32xf32>
    %189 = vector.extract_strided_slice %5 {offsets = [48, 0], sizes = [8, 96], strides = [1, 1]} : vector<64x96xf32> to vector<8x96xf32>
    %cst_34 = arith.constant dense<0.000000e+00> : vector<8x96xf32>
    %190 = tpu.matmul %188, %6, %cst_34 {dimension_numbers = #tpu.dot_dimension_numbers<[1], [0], [0], [1], [0, 0, 1, 1], [], []>} : vector<8x32xf32>, vector<32x96xf32>, vector<8x96xf32> -> vector<8x96xf32>
    %191 = vector.broadcast %7 : vector<1x96xf32> to vector<8x96xf32>
    %192 = arith.addf %190, %191 : vector<8x96xf32>
    %193 = vector.extract_strided_slice %189 {offsets = [0, 0], sizes = [8, 32], strides = [1, 1]} : vector<8x96xf32> to vector<8x32xf32>
    %194 = vector.extract_strided_slice %192 {offsets = [0, 0], sizes = [8, 32], strides = [1, 1]} : vector<8x96xf32> to vector<8x32xf32>
    %195 = arith.addf %193, %194 : vector<8x32xf32>
    %196 = arith.negf %195 : vector<8x32xf32>
    %197 = math.exp %196 : vector<8x32xf32>
    %cst_35 = arith.constant 1.000000e+00 : f32
    %198 = vector.broadcast %cst_35 : f32 to vector<8x32xf32>
    %199 = arith.addf %198, %197 : vector<8x32xf32>
    %200 = arith.divf %198, %199 : vector<8x32xf32>
    %201 = vector.extract_strided_slice %189 {offsets = [0, 32], sizes = [8, 32], strides = [1, 1]} : vector<8x96xf32> to vector<8x32xf32>
    %202 = vector.extract_strided_slice %192 {offsets = [0, 32], sizes = [8, 32], strides = [1, 1]} : vector<8x96xf32> to vector<8x32xf32>
    %203 = arith.addf %201, %202 : vector<8x32xf32>
    %204 = arith.negf %203 : vector<8x32xf32>
    %205 = math.exp %204 : vector<8x32xf32>
    %cst_36 = arith.constant 1.000000e+00 : f32
    %206 = vector.broadcast %cst_36 : f32 to vector<8x32xf32>
    %207 = arith.addf %206, %205 : vector<8x32xf32>
    %208 = arith.divf %206, %207 : vector<8x32xf32>
    %209 = vector.extract_strided_slice %189 {offsets = [0, 64], sizes = [8, 32], strides = [1, 1]} : vector<8x96xf32> to vector<8x32xf32>
    %210 = vector.extract_strided_slice %192 {offsets = [0, 64], sizes = [8, 32], strides = [1, 1]} : vector<8x96xf32> to vector<8x32xf32>
    %211 = arith.mulf %200, %210 : vector<8x32xf32>
    %212 = arith.addf %209, %211 : vector<8x32xf32>
    %213 = math.tanh %212 : vector<8x32xf32>
    %cst_37 = arith.constant 1.000000e+00 : f32
    %214 = vector.broadcast %cst_37 : f32 to vector<8x32xf32>
    %215 = arith.subf %214, %208 : vector<8x32xf32>
    %216 = arith.mulf %215, %213 : vector<8x32xf32>
    %217 = arith.mulf %208, %188 : vector<8x32xf32>
    %218 = arith.addf %216, %217 : vector<8x32xf32>
    %219 = vector.extract_strided_slice %5 {offsets = [56, 0], sizes = [8, 96], strides = [1, 1]} : vector<64x96xf32> to vector<8x96xf32>
    %cst_38 = arith.constant dense<0.000000e+00> : vector<8x96xf32>
    %220 = tpu.matmul %218, %6, %cst_38 {dimension_numbers = #tpu.dot_dimension_numbers<[1], [0], [0], [1], [0, 0, 1, 1], [], []>} : vector<8x32xf32>, vector<32x96xf32>, vector<8x96xf32> -> vector<8x96xf32>
    %221 = vector.broadcast %7 : vector<1x96xf32> to vector<8x96xf32>
    %222 = arith.addf %220, %221 : vector<8x96xf32>
    %223 = vector.extract_strided_slice %219 {offsets = [0, 0], sizes = [8, 32], strides = [1, 1]} : vector<8x96xf32> to vector<8x32xf32>
    %224 = vector.extract_strided_slice %222 {offsets = [0, 0], sizes = [8, 32], strides = [1, 1]} : vector<8x96xf32> to vector<8x32xf32>
    %225 = arith.addf %223, %224 : vector<8x32xf32>
    %226 = arith.negf %225 : vector<8x32xf32>
    %227 = math.exp %226 : vector<8x32xf32>
    %cst_39 = arith.constant 1.000000e+00 : f32
    %228 = vector.broadcast %cst_39 : f32 to vector<8x32xf32>
    %229 = arith.addf %228, %227 : vector<8x32xf32>
    %230 = arith.divf %228, %229 : vector<8x32xf32>
    %231 = vector.extract_strided_slice %219 {offsets = [0, 32], sizes = [8, 32], strides = [1, 1]} : vector<8x96xf32> to vector<8x32xf32>
    %232 = vector.extract_strided_slice %222 {offsets = [0, 32], sizes = [8, 32], strides = [1, 1]} : vector<8x96xf32> to vector<8x32xf32>
    %233 = arith.addf %231, %232 : vector<8x32xf32>
    %234 = arith.negf %233 : vector<8x32xf32>
    %235 = math.exp %234 : vector<8x32xf32>
    %cst_40 = arith.constant 1.000000e+00 : f32
    %236 = vector.broadcast %cst_40 : f32 to vector<8x32xf32>
    %237 = arith.addf %236, %235 : vector<8x32xf32>
    %238 = arith.divf %236, %237 : vector<8x32xf32>
    %239 = vector.extract_strided_slice %219 {offsets = [0, 64], sizes = [8, 32], strides = [1, 1]} : vector<8x96xf32> to vector<8x32xf32>
    %240 = vector.extract_strided_slice %222 {offsets = [0, 64], sizes = [8, 32], strides = [1, 1]} : vector<8x96xf32> to vector<8x32xf32>
    %241 = arith.mulf %230, %240 : vector<8x32xf32>
    %242 = arith.addf %239, %241 : vector<8x32xf32>
    %243 = math.tanh %242 : vector<8x32xf32>
    %cst_41 = arith.constant 1.000000e+00 : f32
    %244 = vector.broadcast %cst_41 : f32 to vector<8x32xf32>
    %245 = arith.subf %244, %238 : vector<8x32xf32>
    %246 = arith.mulf %245, %243 : vector<8x32xf32>
    %247 = arith.mulf %238, %218 : vector<8x32xf32>
    %248 = arith.addf %246, %247 : vector<8x32xf32>
    %249 = tpu.concatenate %38, %68, %98, %128, %158, %188, %218, %248 in 0 : vector<8x32xf32>, vector<8x32xf32>, vector<8x32xf32>, vector<8x32xf32>, vector<8x32xf32>, vector<8x32xf32>, vector<8x32xf32>, vector<8x32xf32> -> vector<64x32xf32>
    %cst_42 = arith.constant 0.000000e+00 : f32
    %250 = vector.broadcast %cst_42 : f32 to vector<64x32xf32>
    %251 = arith.maximumf %249, %250 : vector<64x32xf32>
    %c0_43 = arith.constant 0 : index
    %c0_44 = arith.constant 0 : index
    %252 = vector.load %arg6[%c0_43, %c0_44] : memref<32x128xf32, #tpu.memory_space<vmem>>, vector<32x128xf32>
    %cst_45 = arith.constant dense<0.000000e+00> : vector<64x128xf32>
    %253 = tpu.matmul %251, %252, %cst_45 {dimension_numbers = #tpu.dot_dimension_numbers<[1], [0], [0], [1], [0, 0, 1, 1], [], []>} : vector<64x32xf32>, vector<32x128xf32>, vector<64x128xf32> -> vector<64x128xf32>
    %c0_46 = arith.constant 0 : index
    %c0_47 = arith.constant 0 : index
    %254 = vector.load %arg7[%c0_46, %c0_47] : memref<1x128xf32, #tpu.memory_space<vmem>>, vector<1x128xf32>
    %255 = vector.broadcast %254 : vector<1x128xf32> to vector<64x128xf32>
    %256 = arith.addf %253, %255 : vector<64x128xf32>
    %c0_48 = arith.constant 0 : index
    %c0_49 = arith.constant 0 : index
    %257 = vector.load %arg8[%c0_48, %c0_49] : memref<64x128xf32, #tpu.memory_space<vmem>>, vector<64x128xf32>
    tpu.vector_store %arg8[%c0_48, %c0_49], %256 {strides = array<i32>} : memref<64x128xf32, #tpu.memory_space<vmem>>, vector<64x128xf32>,
    return
  }
  func.func @transform_0(%arg0: i32) -> (i32, i32) {
    %c0_i32 = arith.constant 0 : i32
    %c0_i32_0 = arith.constant 0 : i32
    return %arg0, %c0_i32 : i32, i32
  }
  func.func @transform_1(%arg0: i32) -> (i32, i32) {
    %c0_i32 = arith.constant 0 : i32
    %c0_i32_0 = arith.constant 0 : i32
    %c0_i32_1 = arith.constant 0 : i32
    return %c0_i32, %c0_i32_0 : i32, i32
  }
  func.func @transform_2(%arg0: i32) -> (i32, i32) {
    %c0_i32 = arith.constant 0 : i32
    %c0_i32_0 = arith.constant 0 : i32
    %c0_i32_1 = arith.constant 0 : i32
    return %c0_i32, %c0_i32_0 : i32, i32
  }
  func.func @transform_3(%arg0: i32) -> (i32, i32) {
    %c0_i32 = arith.constant 0 : i32
    %c0_i32_0 = arith.constant 0 : i32
    %c0_i32_1 = arith.constant 0 : i32
    return %c0_i32, %c0_i32_0 : i32, i32
  }
  func.func @transform_4(%arg0: i32) -> (i32, i32) {
    %c0_i32 = arith.constant 0 : i32
    %c0_i32_0 = arith.constant 0 : i32
    %c0_i32_1 = arith.constant 0 : i32
    return %c0_i32, %c0_i32_0 : i32, i32
  }
  func.func @transform_5(%arg0: i32) -> (i32, i32) {
    %c0_i32 = arith.constant 0 : i32
    %c0_i32_0 = arith.constant 0 : i32
    %c0_i32_1 = arith.constant 0 : i32
    return %c0_i32, %c0_i32_0 : i32, i32
  }
  func.func @transform_6(%arg0: i32) -> (i32, i32) {
    %c0_i32 = arith.constant 0 : i32
    %c0_i32_0 = arith.constant 0 : i32
    %c0_i32_1 = arith.constant 0 : i32
    return %c0_i32, %c0_i32_0 : i32, i32
  }
  func.func @transform_7(%arg0: i32) -> (i32, i32) {
    %c0_i32 = arith.constant 0 : i32
    %c0_i32_0 = arith.constant 0 : i32
    return %arg0, %c0_i32 : i32, i32
  }
}

</mosaic_0001>

<llo_original>
// kernel: tpu_custom_call.1
$region0: #{tpu_custom_call.1}
  #allocation0 [shape = 'u32[]', space=smem, size = 0x4, offset = 0x4, fixed_abs, tag = 'smem constant byte address 0x4 - core index']
  #allocation1 [shape = 'u32[72,128]{1,0:T(1,128)}', space=vmem, size = 0x9000, scoped, tag = 'internal scratch']
  %s0 = inlined_call_operand.vmem [shape: f32[128,16], index: 0, kind: input, shape index: {}]
  %s1 = inlined_call_operand.vmem [shape: f32[16,96], index: 1, kind: input, shape index: {}]
  %s2 = inlined_call_operand.vmem [shape: f32[1,96], index: 2, kind: input, shape index: {}]
  %s3 = inlined_call_operand.vmem [shape: f32[32,96], index: 3, kind: input, shape index: {}]
  %s4 = inlined_call_operand.vmem [shape: f32[1,96], index: 4, kind: input, shape index: {}]
  %s5 = inlined_call_operand.vmem [shape: f32[32,128], index: 5, kind: input, shape index: {}]
  %s6 = inlined_call_operand.vmem [shape: f32[1,128], index: 6, kind: input, shape index: {}]
  %s7 = inlined_call_operand.hbm [shape: f32[128,128], index: 7, kind: output, shape index: {}]
  %s8 = sld [smem:[#allocation0]]
  $region61: #{tpu_custom_call.1} parent=0
    _
  %s10 = ssub.s32 1, %s8
  %s11 = scalar_select 0, %s10, %s8
  $region1: #{tpu_custom_call.1} parent=0
    #allocation2 [shape = 'u8[65536]{0}', space=vmem, size = 0x10000, scoped, tag = 'output window, operand 0']
    #allocation3 [shape = 's32[2]{0}', space=sflag, size = 0x8, scoped, tag = 'scoped memory for tpu_custom_call.1']
    %12 = vsyncpa [#allocation3], 0
    %s13 = scalar_lea.sflag [#allocation3], 1
    %14 = vsyncpa %s13, 0
    loop: start=0, step=1, limit=4
    $region2: #{tpu_custom_call.1} parent=1 // loop_pre_header
      _
    $region3: #{tpu_custom_call.1} parent=1 // loop_header
      %s16 = sphi 0, %s20
      %p17 = scmp.ge.s32.totalorder %s16, 4
      %s26 = sphi 0, %s28
      %s29 = sphi 0, %s26
      %s30 = sphi 0, %s29
      %s46 = sphi 0, %s30
      %s50 = sphi 0, %s50
      %s52 = sphi 0, %s50
      %s53 = sphi 0, %s52
      %s67 = sphi 0, %s53
      %s71 = sphi 0, %s71
      %s73 = sphi 0, %s71
      %s74 = sphi 0, %s73
      %s88 = sphi 0, %s74
      %s92 = sphi 0, %s92
      %s94 = sphi 0, %s92
      %s95 = sphi 0, %s94
      %s109 = sphi 0, %s95
      %s113 = sphi 0, %s113
      %s115 = sphi 0, %s113
      %s116 = sphi 0, %s115
      %s130 = sphi 0, %s116
      %s134 = sphi 0, %s134
      %s136 = sphi 0, %s134
      %s137 = sphi 0, %s136
      %s151 = sphi 0, %s137
      %s155 = sphi 0, %s155
      %s157 = sphi 0, %s155
      %s158 = sphi 0, %s157
      %s172 = sphi 0, %s158
      %s178 = sphi 0, %s180
      %s181 = sphi 0, %s178
      %s182 = sphi 0, %s181
      %s198 = sphi 0, %s182
    $region4: #{tpu_custom_call.1} parent=1 // loop_header_branch
      %19 = sbr.rel (%p17) target = $region8
    $region5: #{tpu_custom_call.1} parent=1 // loop_body
      %s21 = ssub.s32 %s16, 1
      %s22 = ssub.s32 %s16, 2
      %s23 = sadd.s32 %s16, 1
      %s24 = ssub.s32 %s16, %s23
      %p25 = scmp.eq.s32.totalorder %s24, 0
      %s27 = sadd.s32 %s26, 1
      %s28 = scalar_select %p25, %s26, %s27
      %p31 = pneg %p25
      %p32 = scmp.eq.s32.totalorder %s16, 1
      %p33 = por %p31, %p32
      %p34 = scmp.ne.s32.totalorder %s26, %s29
      %p35 = scmp.eq.s32.totalorder %s16, 0
      %p36 = por %p34, %p35
      %p37 = scmp.ne.s32.totalorder %s26, %s29
      %p38 = scmp.eq.s32.totalorder %s21, 1
      %p39 = por %p37, %p38
      %p40 = scmp.ne.s32.totalorder %s29, %s30
      %p41 = scmp.eq.s32.totalorder %s21, 0
      %p42 = por %p40, %p41
      %p43 = scmp.ne.s32.totalorder %s29, %s30
      %p44 = scmp.eq.s32.totalorder %s22, 1
      %p45 = por %p43, %p44
      %p47 = scmp.ne.s32.totalorder %s30, %s46
      %p48 = scmp.eq.s32.totalorder %s22, 0
      %p49 = por %p47, %p48
      %s51 = sadd.s32 %s50, 1
      %p54 = scmp.eq.s32.totalorder %s16, 1
      %p55 = scmp.ne.s32.totalorder %s50, %s52
      %p56 = scmp.eq.s32.totalorder %s16, 0
      %p57 = por %p55, %p56
      %p58 = scmp.ne.s32.totalorder %s50, %s52
      %p59 = scmp.eq.s32.totalorder %s21, 1
      %p60 = por %p58, %p59
      %p61 = scmp.ne.s32.totalorder %s52, %s53
      %p62 = scmp.eq.s32.totalorder %s21, 0
      %p63 = por %p61, %p62
      %p64 = scmp.ne.s32.totalorder %s52, %s53
      %p65 = scmp.eq.s32.totalorder %s22, 1
      %p66 = por %p64, %p65
      %p68 = scmp.ne.s32.totalorder %s53, %s67
      %p69 = scmp.eq.s32.totalorder %s22, 0
      %p70 = por %p68, %p69
      %s72 = sadd.s32 %s71, 1
      %p75 = scmp.eq.s32.totalorder %s16, 1
      %p76 = scmp.ne.s32.totalorder %s71, %s73
      %p77 = scmp.eq.s32.totalorder %s16, 0
      %p78 = por %p76, %p77
      %p79 = scmp.ne.s32.totalorder %s71, %s73
      %p80 = scmp.eq.s32.totalorder %s21, 1
      %p81 = por %p79, %p80
      %p82 = scmp.ne.s32.totalorder %s73, %s74
      %p83 = scmp.eq.s32.totalorder %s21, 0
      %p84 = por %p82, %p83
      %p85 = scmp.ne.s32.totalorder %s73, %s74
      %p86 = scmp.eq.s32.totalorder %s22, 1
      %p87 = por %p85, %p86
      %p89 = scmp.ne.s32.totalorder %s74, %s88
      %p90 = scmp.eq.s32.totalorder %s22, 0
      %p91 = por %p89, %p90
      %s93 = sadd.s32 %s92, 1
      %p96 = scmp.eq.s32.totalorder %s16, 1
      %p97 = scmp.ne.s32.totalorder %s92, %s94
      %p98 = scmp.eq.s32.totalorder %s16, 0
      %p99 = por %p97, %p98
      %p100 = scmp.ne.s32.totalorder %s92, %s94
      %p101 = scmp.eq.s32.totalorder %s21, 1
      %p102 = por %p100, %p101
      %p103 = scmp.ne.s32.totalorder %s94, %s95
      %p104 = scmp.eq.s32.totalorder %s21, 0
      %p105 = por %p103, %p104
      %p106 = scmp.ne.s32.totalorder %s94, %s95
      %p107 = scmp.eq.s32.totalorder %s22, 1
      %p108 = por %p106, %p107
      %p110 = scmp.ne.s32.totalorder %s95, %s109
      %p111 = scmp.eq.s32.totalorder %s22, 0
      %p112 = por %p110, %p111
      %s114 = sadd.s32 %s113, 1
      %p117 = scmp.eq.s32.totalorder %s16, 1
      %p118 = scmp.ne.s32.totalorder %s113, %s115
      %p119 = scmp.eq.s32.totalorder %s16, 0
      %p120 = por %p118, %p119
      %p121 = scmp.ne.s32.totalorder %s113, %s115
      %p122 = scmp.eq.s32.totalorder %s21, 1
      %p123 = por %p121, %p122
      %p124 = scmp.ne.s32.totalorder %s115, %s116
      %p125 = scmp.eq.s32.totalorder %s21, 0
      %p126 = por %p124, %p125
      %p127 = scmp.ne.s32.totalorder %s115, %s116
      %p128 = scmp.eq.s32.totalorder %s22, 1
      %p129 = por %p127, %p128
      %p131 = scmp.ne.s32.totalorder %s116, %s130
      %p132 = scmp.eq.s32.totalorder %s22, 0
      %p133 = por %p131, %p132
      %s135 = sadd.s32 %s134, 1
      %p138 = scmp.eq.s32.totalorder %s16, 1
      %p139 = scmp.ne.s32.totalorder %s134, %s136
      %p140 = scmp.eq.s32.totalorder %s16, 0
      %p141 = por %p139, %p140
      %p142 = scmp.ne.s32.totalorder %s134, %s136
      %p143 = scmp.eq.s32.totalorder %s21, 1
      %p144 = por %p142, %p143
      %p145 = scmp.ne.s32.totalorder %s136, %s137
      %p146 = scmp.eq.s32.totalorder %s21, 0
      %p147 = por %p145, %p146
      %p148 = scmp.ne.s32.totalorder %s136, %s137
      %p149 = scmp.eq.s32.totalorder %s22, 1
      %p150 = por %p148, %p149
      %p152 = scmp.ne.s32.totalorder %s137, %s151
      %p153 = scmp.eq.s32.totalorder %s22, 0
      %p154 = por %p152, %p153
      %s156 = sadd.s32 %s155, 1
      %p159 = scmp.eq.s32.totalorder %s16, 1
      %p160 = scmp.ne.s32.totalorder %s155, %s157
      %p161 = scmp.eq.s32.totalorder %s16, 0
      %p162 = por %p160, %p161
      %p163 = scmp.ne.s32.totalorder %s155, %s157
      %p164 = scmp.eq.s32.totalorder %s21, 1
      %p165 = por %p163, %p164
      %p166 = scmp.ne.s32.totalorder %s157, %s158
      %p167 = scmp.eq.s32.totalorder %s21, 0
      %p168 = por %p166, %p167
      %p169 = scmp.ne.s32.totalorder %s157, %s158
      %p170 = scmp.eq.s32.totalorder %s22, 1
      %p171 = por %p169, %p170
      %p173 = scmp.ne.s32.totalorder %s158, %s172
      %p174 = scmp.eq.s32.totalorder %s22, 0
      %p175 = por %p173, %p174
      %s176 = ssub.s32 %s16, %s23
      %p177 = scmp.eq.s32.totalorder %s176, 0
      %s179 = sadd.s32 %s178, 1
      %s180 = scalar_select %p177, %s178, %s179
      %p183 = pneg %p177
      %p184 = scmp.eq.s32.totalorder %s16, 1
      %p185 = por %p183, %p184
      %p186 = scmp.ne.s32.totalorder %s178, %s181
      %p187 = scmp.eq.s32.totalorder %s16, 0
      %p188 = por %p186, %p187
      %p189 = scmp.ne.s32.totalorder %s178, %s181
      %p190 = scmp.eq.s32.totalorder %s21, 1
      %p191 = por %p189, %p190
      %p192 = scmp.ne.s32.totalorder %s181, %s182
      %p193 = scmp.eq.s32.totalorder %s21, 0
      %p194 = por %p192, %p193
      %p195 = scmp.ne.s32.totalorder %s181, %s182
      %p196 = scmp.eq.s32.totalorder %s22, 1
      %p197 = por %p195, %p196
      %p199 = scmp.ne.s32.totalorder %s182, %s198
      %p200 = scmp.eq.s32.totalorder %s22, 0
      %p201 = por %p199, %p200
      %p202 = scmp.le.s32.totalorder 1, %s16
      %p203 = scmp.lt.s32.totalorder %s16, 3
      %p204 = pnand %p202, %p203
      %p205 = pneg %p204
      // Predicated region
      $region9: #{tpu_custom_call.1} parent=5 // pred_check
        _
      $region10: #{tpu_custom_call.1} parent=5 // pred_check_branch
        %207 = sbr.rel (%p204) target = $region12
      $region11: #{tpu_custom_call.1} parent=5 // pred_region
        %s208 = ssub.s32 %s16, 1
        // Predicated region
        $region13: #{tpu_custom_call.1} parent=11 // pred_check
          %p209 = pneg %p63
        $region14: #{tpu_custom_call.1} parent=11 // pred_check_branch
          %211 = sbr.rel (%p209) target = $region16
        $region15: #{tpu_custom_call.1} parent=11 // pred_region
          _
        $region16: #{tpu_custom_call.1} parent=11 // pred_fallthru
          _
        // Predicated region
        $region17: #{tpu_custom_call.1} parent=11 // pred_check
          %p212 = pneg %p84
        $region18: #{tpu_custom_call.1} parent=11 // pred_check_branch
          %214 = sbr.rel (%p212) target = $region20
        $region19: #{tpu_custom_call.1} parent=11 // pred_region
          _
        $region20: #{tpu_custom_call.1} parent=11 // pred_fallthru
          _
        // Predicated region
        $region21: #{tpu_custom_call.1} parent=11 // pred_check
          %p215 = pneg %p105
        $region22: #{tpu_custom_call.1} parent=11 // pred_check_branch
          %217 = sbr.rel (%p215) target = $region24
        $region23: #{tpu_custom_call.1} parent=11 // pred_region
          _
        $region24: #{tpu_custom_call.1} parent=11 // pred_fallthru
          _
        // Predicated region
        $region25: #{tpu_custom_call.1} parent=11 // pred_check
          %p218 = pneg %p126
        $region26: #{tpu_custom_call.1} parent=11 // pred_check_branch
          %220 = sbr.rel (%p218) target = $region28
        $region27: #{tpu_custom_call.1} parent=11 // pred_region
          _
        $region28: #{tpu_custom_call.1} parent=11 // pred_fallthru
          _
        // Predicated region
        $region29: #{tpu_custom_call.1} parent=11 // pred_check
          %p221 = pneg %p147
        $region30: #{tpu_custom_call.1} parent=11 // pred_check_branch
          %223 = sbr.rel (%p221) target = $region32
        $region31: #{tpu_custom_call.1} parent=11 // pred_region
          _
        $region32: #{tpu_custom_call.1} parent=11 // pred_fallthru
          _
        // Predicated region
        $region33: #{tpu_custom_call.1} parent=11 // pred_check
          %p224 = pneg %p168
        $region34: #{tpu_custom_call.1} parent=11 // pred_check_branch
          %226 = sbr.rel (%p224) target = $region36
        $region35: #{tpu_custom_call.1} parent=11 // pred_region
          _
        $region36: #{tpu_custom_call.1} parent=11 // pred_fallthru
          _
      $region12: #{tpu_custom_call.1} parent=5 // pred_fallthru
        _
      %p227 = scmp.lt.s32.totalorder %s16, 2
      // Predicated region
      $region37: #{tpu_custom_call.1} parent=5 // pred_check
        %p228 = pneg %p227
      $region38: #{tpu_custom_call.1} parent=5 // pred_check_branch
        %230 = sbr.rel (%p228) target = $region40
      $region39: #{tpu_custom_call.1} parent=5 // pred_region
        // Predicated region
        $region41: #{tpu_custom_call.1} parent=39 // pred_check
          %p231 = pneg %p36
        $region42: #{tpu_custom_call.1} parent=39 // pred_check_branch
          %233 = sbr.rel (%p231) target = $region44
        $region43: #{tpu_custom_call.1} parent=39 // pred_region
          %s234 = smul.u32 8, %s16
          %p235 = scmp.lt.s32.totalorder %s234, 15
          %s236 = scalar_select %p235, %s234, 15
          %s237 = smul.addr %s236, 8
          %s238 = scalar_lea.vmem %s0, %s237
          %s239 = smul.u32 8, %s16
        $region44: #{tpu_custom_call.1} parent=39 // pred_fallthru
          _
      $region40: #{tpu_custom_call.1} parent=5 // pred_fallthru
        _
      %p240 = scmp.le.s32.totalorder 1, %s16
      %p241 = scmp.lt.s32.totalorder %s16, 3
      %p242 = pnand %p240, %p241
      %p243 = pneg %p242
      // Predicated region
      $region45: #{tpu_custom_call.1} parent=5 // pred_check
        _
      $region46: #{tpu_custom_call.1} parent=5 // pred_check_branch
        %245 = sbr.rel (%p242) target = $region48
      $region47: #{tpu_custom_call.1} parent=5 // pred_region
        %s246 = ssub.s32 %s16, 1
        %s247 = smul.u32 8, %s21
        %p248 = scmp.lt.s32.totalorder %s247, 15
        %s249 = scalar_select %p248, %s247, 15
        %s250 = smul.addr %s249, 8
        %s251 = scalar_lea.vmem %s0, %s250
        %p252 = pneg %p42
        %p253 = pneg %p39
        %p254 = pneg %p63
        %p255 = pneg %p60
        %p256 = pneg %p84
        %p257 = pneg %p81
        %p258 = pneg %p105
        %p259 = pneg %p102
        %p260 = pneg %p126
        %p261 = pneg %p123
        %p262 = pneg %p147
        %p263 = pneg %p144
        %p264 = pneg %p168
        %p265 = pneg %p165
        %p266 = pneg %p194
        %p267 = pneg %p191
        %s268 = sand.u32 %s181, 1
        %s269 = scalar_lea.sflag [#allocation3], %s268
        %s270 = sand.u32 %s181, 1
        %s271 = smul.addr %s270, 64
        %s272 = scalar_lea.vmem [#allocation2], %s271
        %s273 = smul.u32 8, %s21
        %p274 = scmp.lt.s32.totalorder %s273, 15
        %s275 = scalar_select %p274, %s273, 15
        %s276 = smul.addr %s275, 8
        %s277 = scalar_lea.vmem %s0, %s276
        %s278 = smul.u32 8, %s21
        %s279 = smul.u32 8, %s21
        %v280 = vld [vmem:[%s277] sm:$0xff]
        %v281 = vld [vmem:[%s277 + $0x8] sm:$0xff]
        %v282 = vld [vmem:[%s277 + $0x10] sm:$0xff]
        %v283 = vld [vmem:[%s277 + $0x18] sm:$0xff]
        %v284 = vld [vmem:[%s277 + $0x20] sm:$0xff]
        %v285 = vld [vmem:[%s277 + $0x28] sm:$0xff]
        %v286 = vld [vmem:[%s277 + $0x30] sm:$0xff]
        %v287 = vld [vmem:[%s277 + $0x38] sm:$0xff]
        %v288 = vld [vmem:[%s1] sm:$0xff]
        %v289 = vld [vmem:[%s1 + $0x8] sm:$0xff]
        %v290 = vld [vmem:[%s2] sm:$0x1]
        %v292 = vperm.slane %v290, 0
        %vm294 = vcmask 130048
        %v296 = vsel %vm294, %v280, 0
        %v299 = vsel %vm294, %v281, 0
        %v302 = vsel %vm294, %v282, 0
        %v305 = vsel %vm294, %v283, 0
        %v308 = vsel %vm294, %v284, 0
        %v311 = vsel %vm294, %v285, 0
        %v314 = vsel %vm294, %v286, 0
        %v317 = vsel %vm294, %v287, 0
        %319 = vmatpush.msra.mxu0 0.0
        %320 = vmatpush.msra.mxu0 0.0
        %321 = vmatpush.msra.mxu0 0.0
        %322 = vmatpush.msra.mxu0 0.0
        %323 = vmatpush.msra.mxu0 0.0
        %324 = vmatpush.msra.mxu0 0.0
        %325 = vmatpush.msra.mxu0 0.0
        %326 = vmatpush.msra.mxu0 0.0
        %327 = vmatpush.msra.mxu0 0.0
        %328 = vmatpush.msra.mxu0 0.0
        %329 = vmatpush.msra.mxu0 0.0
        %330 = vmatpush.msra.mxu0 0.0
        %331 = vmatpush.msra.mxu0 0.0
        %332 = vmatpush.msra.mxu0 0.0
        %333 = vmatpush.msra.mxu0 %v289
        %334 = vmatpush.msra.mxu0 %v288
        %335 = vmatmul.f32.gmra.mxu0 %v296
        %v336 = vpop.f32.mrf.mxu0
        %v337 = vadd.f32 %v292, %v336
        %338 = vmatmul.f32.gmra.mxu0 %v299
        %v339 = vpop.f32.mrf.mxu0
        %v340 = vadd.f32 %v292, %v339
        %341 = vmatmul.f32.gmra.mxu0 %v302
        %v342 = vpop.f32.mrf.mxu0
        %v343 = vadd.f32 %v292, %v342
        %344 = vmatmul.f32.gmra.mxu0 %v305
        %v345 = vpop.f32.mrf.mxu0
        %v346 = vadd.f32 %v292, %v345
        %347 = vmatmul.f32.gmra.mxu0 %v308
        %v348 = vpop.f32.mrf.mxu0
        %v349 = vadd.f32 %v292, %v348
        %350 = vmatmul.f32.gmra.mxu0 %v311
        %v351 = vpop.f32.mrf.mxu0
        %v352 = vadd.f32 %v292, %v351
        %353 = vmatmul.f32.gmra.mxu0 %v314
        %v354 = vpop.f32.mrf.mxu0
        %v355 = vadd.f32 %v292, %v354
        %356 = vmatmul.f32.gmra.mxu0 %v317
        %v357 = vpop.f32.mrf.mxu0
        %v358 = vadd.f32 %v292, %v357
        %359 = vdwg.mxu0
        %v360 = vld [vmem:[%s3] sm:$0xff]
        %v361 = vld [vmem:[%s3 + $0x8] sm:$0xff]
        %v362 = vld [vmem:[%s3 + $0x10] sm:$0xff]
        %v363 = vld [vmem:[%s3 + $0x18] sm:$0xff]
        %v364 = vld [vmem:[%s4] sm:$0x1]
        %v366 = vperm.slane %v364, 0
        %vm368 = vcmask 261120
        %v370 = vsel %vm368, 0.0, 0
        %372 = vmatpush.msra.mxu0 0.0
        %373 = vmatpush.msra.mxu0 0.0
        %374 = vmatpush.msra.mxu0 0.0
        %375 = vmatpush.msra.mxu0 0.0
        %376 = vmatpush.msra.mxu0 0.0
        %377 = vmatpush.msra.mxu0 0.0
        %378 = vmatpush.msra.mxu0 0.0
        %379 = vmatpush.msra.mxu0 0.0
        %380 = vmatpush.msra.mxu0 0.0
        %381 = vmatpush.msra.mxu0 0.0
        %382 = vmatpush.msra.mxu0 0.0
        %383 = vmatpush.msra.mxu0 0.0
        %384 = vmatpush.msra.mxu0 %v363
        %385 = vmatpush.msra.mxu0 %v362
        %386 = vmatpush.msra.mxu0 %v361
        %387 = vmatpush.msra.mxu0 %v360
        %388 = vmatmul.f32.gmra.mxu0 %v370
        %v389 = vpop.f32.mrf.mxu0
        %v390 = vadd.f32 %v366, %v389
        %391 = vdwg.mxu0
        %v392 = vadd.f32 %v337, %v390
        %v393 = vxor.u32 %v392, 2147483648
        %v394 = vmul.f32 %v393, 1.442695
        %v395 = vpow.pop %v394
        %v396 = vadd.f32 %v395, 1.0
        %v397 = vrcp.pop %v396
        %v398 = vmul.f32 %v396, %v397
        %v399 = vsub.f32 1.0, %v398
        %v400 = vmul.f32 %v397, %v399
        %v401 = vadd.f32 %v397, %v400
        %vm402 = vweird.f32 %v396
        %vm403 = vweird.f32 %v397
        %vm404 = vmor %vm402, %vm403
        %v405 = vsel %vm404, %v397, %v401
        %v406 = vand.u32 2147483647, %v396
        %vm407 = vcmp.eq.f32.partialorder %v406, 8.507059e+37
        %v408 = vand.u32 %v396, 2147483648
        %v409 = vor.u32 1.1754944e-38, %v408
        %v410 = vsel %vm407, %v409, %v405
        %v411 = vmul.f32 1.0, %v410
        %413 = vrot.lane.b32.xlu0 %v390, 64
        %v414 = vpop.permute.xlu0 %413
        %v416 = vmul.f32 %v411, %v414
        %418 = vrot.lane.b32.xlu0 %v416, 64
        %v419 = vpop.permute.xlu0 %418
        %v421 = vadd.f32 %v337, %v419
        %v422 = vtanh.pop %v421
        %v423 = vsub.f32 1.0, %v411
        %425 = vrot.lane.b32.xlu0 %v422, 96
        %v426 = vpop.permute.xlu0 %425
        %v428 = vmul.f32 %v423, %v426
        %v429 = vmul.f32 %v411, 0.0
        %v430 = vadd.f32 %v428, %v429
        %432 = vrot.lane.b32.xlu0 %v430, 96
        %v433 = vpop.permute.xlu0 %432
        %v434 = vsel %vm368, %v433, 0
        %436 = vmatpush.msra.mxu0 0.0
        %437 = vmatpush.msra.mxu0 0.0
        %438 = vmatpush.msra.mxu0 0.0
        %439 = vmatpush.msra.mxu0 0.0
        %440 = vmatpush.msra.mxu0 0.0
        %441 = vmatpush.msra.mxu0 0.0
        %442 = vmatpush.msra.mxu0 0.0
        %443 = vmatpush.msra.mxu0 0.0
        %444 = vmatpush.msra.mxu0 0.0
        %445 = vmatpush.msra.mxu0 0.0
        %446 = vmatpush.msra.mxu0 0.0
        %447 = vmatpush.msra.mxu0 0.0
        %448 = vmatpush.msra.mxu0 %v363
        %449 = vmatpush.msra.mxu0 %v362
        %450 = vmatpush.msra.mxu0 %v361
        %451 = vmatpush.msra.mxu0 %v360
        %452 = vmatmul.f32.gmra.mxu0 %v434
        %v453 = vpop.f32.mrf.mxu0
        %v454 = vadd.f32 %v366, %v453
        %455 = vdwg.mxu0
        %v456 = vadd.f32 %v340, %v454
        %v457 = vxor.u32 %v456, 2147483648
        %v458 = vmul.f32 %v457, 1.442695
        %v459 = vpow.pop %v458
        %v460 = vadd.f32 %v459, 1.0
        %v461 = vrcp.pop %v460
        %v462 = vmul.f32 %v460, %v461
        %v463 = vsub.f32 1.0, %v462
        %v464 = vmul.f32 %v461, %v463
        %v465 = vadd.f32 %v461, %v464
        %vm466 = vweird.f32 %v460
        %vm467 = vweird.f32 %v461
        %vm468 = vmor %vm466, %vm467
        %v469 = vsel %vm468, %v461, %v465
        %v470 = vand.u32 2147483647, %v460
        %vm471 = vcmp.eq.f32.partialorder %v470, 8.507059e+37
        %v472 = vand.u32 %v460, 2147483648
        %v473 = vor.u32 1.1754944e-38, %v472
        %v474 = vsel %vm471, %v473, %v469
        %v475 = vmul.f32 1.0, %v474
        %477 = vrot.lane.b32.xlu0 %v454, 64
        %v478 = vpop.permute.xlu0 %477
        %v480 = vmul.f32 %v475, %v478
        %482 = vrot.lane.b32.xlu0 %v480, 64
        %v483 = vpop.permute.xlu0 %482
        %v485 = vadd.f32 %v340, %v483
        %v486 = vtanh.pop %v485
        %v487 = vsub.f32 1.0, %v475
        %489 = vrot.lane.b32.xlu0 %v486, 96
        %v490 = vpop.permute.xlu0 %489
        %v492 = vmul.f32 %v487, %v490
        %v493 = vmul.f32 %v475, %v430
        %v494 = vadd.f32 %v492, %v493
        %496 = vrot.lane.b32.xlu0 %v494, 96
        %v497 = vpop.permute.xlu0 %496
        %v498 = vsel %vm368, %v497, 0
        %500 = vmatpush.msra.mxu0 0.0
        %501 = vmatpush.msra.mxu0 0.0
        %502 = vmatpush.msra.mxu0 0.0
        %503 = vmatpush.msra.mxu0 0.0
        %504 = vmatpush.msra.mxu0 0.0
        %505 = vmatpush.msra.mxu0 0.0
        %506 = vmatpush.msra.mxu0 0.0
        %507 = vmatpush.msra.mxu0 0.0
        %508 = vmatpush.msra.mxu0 0.0
        %509 = vmatpush.msra.mxu0 0.0
        %510 = vmatpush.msra.mxu0 0.0
        %511 = vmatpush.msra.mxu0 0.0
        %512 = vmatpush.msra.mxu0 %v363
        %513 = vmatpush.msra.mxu0 %v362
        %514 = vmatpush.msra.mxu0 %v361
        %515 = vmatpush.msra.mxu0 %v360
        %516 = vmatmul.f32.gmra.mxu0 %v498
        %v517 = vpop.f32.mrf.mxu0
        %v518 = vadd.f32 %v366, %v517
        %519 = vdwg.mxu0
        %v520 = vadd.f32 %v343, %v518
        %v521 = vxor.u32 %v520, 2147483648
        %v522 = vmul.f32 %v521, 1.442695
        %v523 = vpow.pop %v522
        %v524 = vadd.f32 %v523, 1.0
        %v525 = vrcp.pop %v524
        %v526 = vmul.f32 %v524, %v525
        %v527 = vsub.f32 1.0, %v526
        %v528 = vmul.f32 %v525, %v527
        %v529 = vadd.f32 %v525, %v528
        %vm530 = vweird.f32 %v524
        %vm531 = vweird.f32 %v525
        %vm532 = vmor %vm530, %vm531
        %v533 = vsel %vm532, %v525, %v529
        %v534 = vand.u32 2147483647, %v524
        %vm535 = vcmp.eq.f32.partialorder %v534, 8.507059e+37
        %v536 = vand.u32 %v524, 2147483648
        %v537 = vor.u32 1.1754944e-38, %v536
        %v538 = vsel %vm535, %v537, %v533
        %v539 = vmul.f32 1.0, %v538
        %541 = vrot.lane.b32.xlu0 %v518, 64
        %v542 = vpop.permute.xlu0 %541
        %v544 = vmul.f32 %v539, %v542
        %546 = vrot.lane.b32.xlu0 %v544, 64
        %v547 = vpop.permute.xlu0 %546
        %v549 = vadd.f32 %v343, %v547
        %v550 = vtanh.pop %v549
        %v551 = vsub.f32 1.0, %v539
        %553 = vrot.lane.b32.xlu0 %v550, 96
        %v554 = vpop.permute.xlu0 %553
        %v556 = vmul.f32 %v551, %v554
        %v557 = vmul.f32 %v539, %v494
        %v558 = vadd.f32 %v556, %v557
        %560 = vrot.lane.b32.xlu0 %v558, 96
        %v561 = vpop.permute.xlu0 %560
        %v562 = vsel %vm368, %v561, 0
        %564 = vmatpush.msra.mxu0 0.0
        %565 = vmatpush.msra.mxu0 0.0
        %566 = vmatpush.msra.mxu0 0.0
        %567 = vmatpush.msra.mxu0 0.0
        %568 = vmatpush.msra.mxu0 0.0
        %569 = vmatpush.msra.mxu0 0.0
        %570 = vmatpush.msra.mxu0 0.0
        %571 = vmatpush.msra.mxu0 0.0
        %572 = vmatpush.msra.mxu0 0.0
        %573 = vmatpush.msra.mxu0 0.0
        %574 = vmatpush.msra.mxu0 0.0
        %575 = vmatpush.msra.mxu0 0.0
        %576 = vmatpush.msra.mxu0 %v363
        %577 = vmatpush.msra.mxu0 %v362
        %578 = vmatpush.msra.mxu0 %v361
        %579 = vmatpush.msra.mxu0 %v360
        %580 = vmatmul.f32.gmra.mxu0 %v562
        %v581 = vpop.f32.mrf.mxu0
        %v582 = vadd.f32 %v366, %v581
        %583 = vdwg.mxu0
        %v584 = vadd.f32 %v346, %v582
        %v585 = vxor.u32 %v584, 2147483648
        %v586 = vmul.f32 %v585, 1.442695
        %v587 = vpow.pop %v586
        %v588 = vadd.f32 %v587, 1.0
        %v589 = vrcp.pop %v588
        %v590 = vmul.f32 %v588, %v589
        %v591 = vsub.f32 1.0, %v590
        %v592 = vmul.f32 %v589, %v591
        %v593 = vadd.f32 %v589, %v592
        %vm594 = vweird.f32 %v588
        %vm595 = vweird.f32 %v589
        %vm596 = vmor %vm594, %vm595
        %v597 = vsel %vm596, %v589, %v593
        %v598 = vand.u32 2147483647, %v588
        %vm599 = vcmp.eq.f32.partialorder %v598, 8.507059e+37
        %v600 = vand.u32 %v588, 2147483648
        %v601 = vor.u32 1.1754944e-38, %v600
        %v602 = vsel %vm599, %v601, %v597
        %v603 = vmul.f32 1.0, %v602
        %605 = vrot.lane.b32.xlu0 %v582, 64
        %v606 = vpop.permute.xlu0 %605
        %v608 = vmul.f32 %v603, %v606
        %610 = vrot.lane.b32.xlu0 %v608, 64
        %v611 = vpop.permute.xlu0 %610
        %v613 = vadd.f32 %v346, %v611
        %v614 = vtanh.pop %v613
        %v615 = vsub.f32 1.0, %v603
        %617 = vrot.lane.b32.xlu0 %v614, 96
        %v618 = vpop.permute.xlu0 %617
        %v620 = vmul.f32 %v615, %v618
        %v621 = vmul.f32 %v603, %v558
        %v622 = vadd.f32 %v620, %v621
        %624 = vrot.lane.b32.xlu0 %v622, 96
        %v625 = vpop.permute.xlu0 %624
        %v626 = vsel %vm368, %v625, 0
        %628 = vmatpush.msra.mxu0 0.0
        %629 = vmatpush.msra.mxu0 0.0
        %630 = vmatpush.msra.mxu0 0.0
        %631 = vmatpush.msra.mxu0 0.0
        %632 = vmatpush.msra.mxu0 0.0
        %633 = vmatpush.msra.mxu0 0.0
        %634 = vmatpush.msra.mxu0 0.0
        %635 = vmatpush.msra.mxu0 0.0
        %636 = vmatpush.msra.mxu0 0.0
        %637 = vmatpush.msra.mxu0 0.0
        %638 = vmatpush.msra.mxu0 0.0
        %639 = vmatpush.msra.mxu0 0.0
        %640 = vmatpush.msra.mxu0 %v363
        %641 = vmatpush.msra.mxu0 %v362
        %642 = vmatpush.msra.mxu0 %v361
        %643 = vmatpush.msra.mxu0 %v360
        %644 = vmatmul.f32.gmra.mxu0 %v626
        %v645 = vpop.f32.mrf.mxu0
        %v646 = vadd.f32 %v366, %v645
        %647 = vdwg.mxu0
        %v648 = vadd.f32 %v349, %v646
        %v649 = vxor.u32 %v648, 2147483648
        %v650 = vmul.f32 %v649, 1.442695
        %v651 = vpow.pop %v650
        %v652 = vadd.f32 %v651, 1.0
        %v653 = vrcp.pop %v652
        %v654 = vmul.f32 %v652, %v653
        %v655 = vsub.f32 1.0, %v654
        %v656 = vmul.f32 %v653, %v655
        %v657 = vadd.f32 %v653, %v656
        %vm658 = vweird.f32 %v652
        %vm659 = vweird.f32 %v653
        %vm660 = vmor %vm658, %vm659
        %v661 = vsel %vm660, %v653, %v657
        %v662 = vand.u32 2147483647, %v652
        %vm663 = vcmp.eq.f32.partialorder %v662, 8.507059e+37
        %v664 = vand.u32 %v652, 2147483648
        %v665 = vor.u32 1.1754944e-38, %v664
        %v666 = vsel %vm663, %v665, %v661
        %v667 = vmul.f32 1.0, %v666
        %669 = vrot.lane.b32.xlu0 %v646, 64
        %v670 = vpop.permute.xlu0 %669
        %v672 = vmul.f32 %v667, %v670
        %674 = vrot.lane.b32.xlu0 %v672, 64
        %v675 = vpop.permute.xlu0 %674
        %v677 = vadd.f32 %v349, %v675
        %v678 = vtanh.pop %v677
        %v679 = vsub.f32 1.0, %v667
        %681 = vrot.lane.b32.xlu0 %v678, 96
        %v682 = vpop.permute.xlu0 %681
        %v684 = vmul.f32 %v679, %v682
        %v685 = vmul.f32 %v667, %v622
        %v686 = vadd.f32 %v684, %v685
        %688 = vrot.lane.b32.xlu0 %v686, 96
        %v689 = vpop.permute.xlu0 %688
        %v690 = vsel %vm368, %v689, 0
        %692 = vmatpush.msra.mxu0 0.0
        %693 = vmatpush.msra.mxu0 0.0
        %694 = vmatpush.msra.mxu0 0.0
        %695 = vmatpush.msra.mxu0 0.0
        %696 = vmatpush.msra.mxu0 0.0
        %697 = vmatpush.msra.mxu0 0.0
        %698 = vmatpush.msra.mxu0 0.0
        %699 = vmatpush.msra.mxu0 0.0
        %700 = vmatpush.msra.mxu0 0.0
        %701 = vmatpush.msra.mxu0 0.0
        %702 = vmatpush.msra.mxu0 0.0
        %703 = vmatpush.msra.mxu0 0.0
        %704 = vmatpush.msra.mxu0 %v363
        %705 = vmatpush.msra.mxu0 %v362
        %706 = vmatpush.msra.mxu0 %v361
        %707 = vmatpush.msra.mxu0 %v360
        %708 = vmatmul.f32.gmra.mxu0 %v690
        %v709 = vpop.f32.mrf.mxu0
        %v710 = vadd.f32 %v366, %v709
        %711 = vdwg.mxu0
        %v712 = vadd.f32 %v352, %v710
        %v713 = vxor.u32 %v712, 2147483648
        %v714 = vmul.f32 %v713, 1.442695
        %v715 = vpow.pop %v714
        %v716 = vadd.f32 %v715, 1.0
        %v717 = vrcp.pop %v716
        %v718 = vmul.f32 %v716, %v717
        %v719 = vsub.f32 1.0, %v718
        %v720 = vmul.f32 %v717, %v719
        %v721 = vadd.f32 %v717, %v720
        %vm722 = vweird.f32 %v716
        %vm723 = vweird.f32 %v717
        %vm724 = vmor %vm722, %vm723
        %v725 = vsel %vm724, %v717, %v721
        %v726 = vand.u32 2147483647, %v716
        %vm727 = vcmp.eq.f32.partialorder %v726, 8.507059e+37
        %v728 = vand.u32 %v716, 2147483648
        %v729 = vor.u32 1.1754944e-38, %v728
        %v730 = vsel %vm727, %v729, %v725
        %v731 = vmul.f32 1.0, %v730
        %733 = vrot.lane.b32.xlu0 %v710, 64
        %v734 = vpop.permute.xlu0 %733
        %v736 = vmul.f32 %v731, %v734
        %738 = vrot.lane.b32.xlu0 %v736, 64
        %v739 = vpop.permute.xlu0 %738
        %v741 = vadd.f32 %v352, %v739
        %v742 = vtanh.pop %v741
        %v743 = vsub.f32 1.0, %v731
        %745 = vrot.lane.b32.xlu0 %v742, 96
        %v746 = vpop.permute.xlu0 %745
        %v748 = vmul.f32 %v743, %v746
        %v749 = vmul.f32 %v731, %v686
        %v750 = vadd.f32 %v748, %v749
        %752 = vrot.lane.b32.xlu0 %v750, 96
        %v753 = vpop.permute.xlu0 %752
        %v754 = vsel %vm368, %v753, 0
        %756 = vmatpush.msra.mxu0 0.0
        %757 = vmatpush.msra.mxu0 0.0
        %758 = vmatpush.msra.mxu0 0.0
        %759 = vmatpush.msra.mxu0 0.0
        %760 = vmatpush.msra.mxu0 0.0
        %761 = vmatpush.msra.mxu0 0.0
        %762 = vmatpush.msra.mxu0 0.0
        %763 = vmatpush.msra.mxu0 0.0
        %764 = vmatpush.msra.mxu0 0.0
        %765 = vmatpush.msra.mxu0 0.0
        %766 = vmatpush.msra.mxu0 0.0
        %767 = vmatpush.msra.mxu0 0.0
        %768 = vmatpush.msra.mxu0 %v363
        %769 = vmatpush.msra.mxu0 %v362
        %770 = vmatpush.msra.mxu0 %v361
        %771 = vmatpush.msra.mxu0 %v360
        %772 = vmatmul.f32.gmra.mxu0 %v754
        %v773 = vpop.f32.mrf.mxu0
        %v774 = vadd.f32 %v366, %v773
        %775 = vdwg.mxu0
        %v776 = vadd.f32 %v355, %v774
        %v777 = vxor.u32 %v776, 2147483648
        %v778 = vmul.f32 %v777, 1.442695
        %v779 = vpow.pop %v778
        %v780 = vadd.f32 %v779, 1.0
        %v781 = vrcp.pop %v780
        %v782 = vmul.f32 %v780, %v781
        %v783 = vsub.f32 1.0, %v782
        %v784 = vmul.f32 %v781, %v783
        %v785 = vadd.f32 %v781, %v784
        %vm786 = vweird.f32 %v780
        %vm787 = vweird.f32 %v781
        %vm788 = vmor %vm786, %vm787
        %v789 = vsel %vm788, %v781, %v785
        %v790 = vand.u32 2147483647, %v780
        %vm791 = vcmp.eq.f32.partialorder %v790, 8.507059e+37
        %v792 = vand.u32 %v780, 2147483648
        %v793 = vor.u32 1.1754944e-38, %v792
        %v794 = vsel %vm791, %v793, %v789
        %v795 = vmul.f32 1.0, %v794
        %797 = vrot.lane.b32.xlu0 %v774, 64
        %v798 = vpop.permute.xlu0 %797
        %v800 = vmul.f32 %v795, %v798
        %802 = vrot.lane.b32.xlu0 %v800, 64
        %v803 = vpop.permute.xlu0 %802
        %v805 = vadd.f32 %v355, %v803
        %v806 = vtanh.pop %v805
        %v807 = vsub.f32 1.0, %v795
        %809 = vrot.lane.b32.xlu0 %v806, 96
        %v810 = vpop.permute.xlu0 %809
        %v812 = vmul.f32 %v807, %v810
        %v813 = vmul.f32 %v795, %v750
        %v814 = vadd.f32 %v812, %v813
        %816 = vrot.lane.b32.xlu0 %v814, 96
        %v817 = vpop.permute.xlu0 %816
        %v818 = vsel %vm368, %v817, 0
        %820 = vmatpush.msra.mxu0 0.0
        %821 = vmatpush.msra.mxu0 0.0
        %822 = vmatpush.msra.mxu0 0.0
        %823 = vmatpush.msra.mxu0 0.0
        %824 = vmatpush.msra.mxu0 0.0
        %825 = vmatpush.msra.mxu0 0.0
        %826 = vmatpush.msra.mxu0 0.0
        %827 = vmatpush.msra.mxu0 0.0
        %828 = vmatpush.msra.mxu0 0.0
        %829 = vmatpush.msra.mxu0 0.0
        %830 = vmatpush.msra.mxu0 0.0
        %831 = vmatpush.msra.mxu0 0.0
        %832 = vmatpush.msra.mxu0 %v363
        %833 = vmatpush.msra.mxu0 %v362
        %834 = vmatpush.msra.mxu0 %v361
        %835 = vmatpush.msra.mxu0 %v360
        %836 = vmatmul.f32.gmra.mxu0 %v818
        %v837 = vpop.f32.mrf.mxu0
        %v838 = vadd.f32 %v366, %v837
        %839 = vdwg.mxu0
        %v840 = vadd.f32 %v358, %v838
        %v841 = vxor.u32 %v840, 2147483648
        %v842 = vmul.f32 %v841, 1.442695
        %v843 = vpow.pop %v842
        %v844 = vadd.f32 %v843, 1.0
        %v845 = vrcp.pop %v844
        %v846 = vmul.f32 %v844, %v845
        %v847 = vsub.f32 1.0, %v846
        %v848 = vmul.f32 %v845, %v847
        %v849 = vadd.f32 %v845, %v848
        %vm850 = vweird.f32 %v844
        %vm851 = vweird.f32 %v845
        %vm852 = vmor %vm850, %vm851
        %v853 = vsel %vm852, %v845, %v849
        %v854 = vand.u32 2147483647, %v844
        %vm855 = vcmp.eq.f32.partialorder %v854, 8.507059e+37
        %v856 = vand.u32 %v844, 2147483648
        %v857 = vor.u32 1.1754944e-38, %v856
        %v858 = vsel %vm855, %v857, %v853
        %v859 = vmul.f32 1.0, %v858
        %861 = vrot.lane.b32.xlu0 %v838, 64
        %v862 = vpop.permute.xlu0 %861
        %v864 = vmul.f32 %v859, %v862
        %866 = vrot.lane.b32.xlu0 %v864, 64
        %v867 = vpop.permute.xlu0 %866
        %v869 = vadd.f32 %v358, %v867
        %v870 = vtanh.pop %v869
        %v871 = vsub.f32 1.0, %v859
        %873 = vrot.lane.b32.xlu0 %v870, 96
        %v874 = vpop.permute.xlu0 %873
        %v876 = vmul.f32 %v871, %v874
        %v877 = vmul.f32 %v859, %v814
        %v878 = vadd.f32 %v876, %v877
        %v879 = vmax.f32 %v430, 0.0
        %v880 = vmax.f32 %v494, 0.0
        %v881 = vmax.f32 %v558, 0.0
        %v882 = vmax.f32 %v622, 0.0
        %v883 = vmax.f32 %v686, 0.0
        %v884 = vmax.f32 %v750, 0.0
        %v885 = vmax.f32 %v814, 0.0
        %v886 = vmax.f32 %v878, 0.0
        %v887 = vld [vmem:[%s5] sm:$0xff]
        %v888 = vld [vmem:[%s5 + $0x8] sm:$0xff]
        %v889 = vld [vmem:[%s5 + $0x10] sm:$0xff]
        %v890 = vld [vmem:[%s5 + $0x18] sm:$0xff]
        %v891 = vld [vmem:[%s6] sm:$0x1]
        %v893 = vperm.slane %v891, 0
        %903 = vrot.lane.b32.xlu0 %v879, 96
        %v904 = vpop.permute.xlu0 %903
        %905 = vrot.lane.b32.xlu0 %v880, 96
        %v906 = vpop.permute.xlu0 %905
        %907 = vrot.lane.b32.xlu0 %v881, 96
        %v908 = vpop.permute.xlu0 %907
        %909 = vrot.lane.b32.xlu0 %v882, 96
        %v910 = vpop.permute.xlu0 %909
        %911 = vrot.lane.b32.xlu0 %v883, 96
        %v912 = vpop.permute.xlu0 %911
        %913 = vrot.lane.b32.xlu0 %v884, 96
        %v914 = vpop.permute.xlu0 %913
        %915 = vrot.lane.b32.xlu0 %v885, 96
        %v916 = vpop.permute.xlu0 %915
        %917 = vrot.lane.b32.xlu0 %v886, 96
        %v918 = vpop.permute.xlu0 %917
        %v919 = vsel %vm368, %v904, 0
        %v921 = vsel %vm368, %v906, 0
        %v923 = vsel %vm368, %v908, 0
        %v925 = vsel %vm368, %v910, 0
        %v927 = vsel %vm368, %v912, 0
        %v929 = vsel %vm368, %v914, 0
        %v931 = vsel %vm368, %v916, 0
        %v933 = vsel %vm368, %v918, 0
        %935 = vmatpush.msra.mxu0 0.0
        %936 = vmatpush.msra.mxu0 0.0
        %937 = vmatpush.msra.mxu0 0.0
        %938 = vmatpush.msra.mxu0 0.0
        %939 = vmatpush.msra.mxu0 0.0
        %940 = vmatpush.msra.mxu0 0.0
        %941 = vmatpush.msra.mxu0 0.0
        %942 = vmatpush.msra.mxu0 0.0
        %943 = vmatpush.msra.mxu0 0.0
        %944 = vmatpush.msra.mxu0 0.0
        %945 = vmatpush.msra.mxu0 0.0
        %946 = vmatpush.msra.mxu0 0.0
        %947 = vmatpush.msra.mxu0 %v890
        %948 = vmatpush.msra.mxu0 %v889
        %949 = vmatpush.msra.mxu0 %v888
        %950 = vmatpush.msra.mxu0 %v887
        %951 = vmatmul.f32.gmra.mxu0 %v919
        %v952 = vpop.f32.mrf.mxu0
        %v953 = vadd.f32 %v893, %v952
        %954 = vmatmul.f32.gmra.mxu0 %v921
        %v955 = vpop.f32.mrf.mxu0
        %v956 = vadd.f32 %v893, %v955
        %957 = vmatmul.f32.gmra.mxu0 %v923
        %v958 = vpop.f32.mrf.mxu0
        %v959 = vadd.f32 %v893, %v958
        %960 = vmatmul.f32.gmra.mxu0 %v925
        %v961 = vpop.f32.mrf.mxu0
        %v962 = vadd.f32 %v893, %v961
        %963 = vmatmul.f32.gmra.mxu0 %v927
        %v964 = vpop.f32.mrf.mxu0
        %v965 = vadd.f32 %v893, %v964
        %966 = vmatmul.f32.gmra.mxu0 %v929
        %v967 = vpop.f32.mrf.mxu0
        %v968 = vadd.f32 %v893, %v967
        %969 = vmatmul.f32.gmra.mxu0 %v931
        %v970 = vpop.f32.mrf.mxu0
        %v971 = vadd.f32 %v893, %v970
        %972 = vmatmul.f32.gmra.mxu0 %v933
        %v973 = vpop.f32.mrf.mxu0
        %v974 = vadd.f32 %v893, %v973
        %975 = vdwg.mxu0
        %976 = vst [vmem:[%s272] sm:$0xff] %v953
        %977 = vst [vmem:[%s272 + $0x8] sm:$0xff] %v956
        %978 = vst [vmem:[%s272 + $0x10] sm:$0xff] %v959
        %979 = vst [vmem:[%s272 + $0x18] sm:$0xff] %v962
        %980 = vst [vmem:[%s272 + $0x20] sm:$0xff] %v965
        %981 = vst [vmem:[%s272 + $0x28] sm:$0xff] %v968
        %982 = vst [vmem:[%s272 + $0x30] sm:$0xff] %v971
        %983 = vst [vmem:[%s272 + $0x38] sm:$0xff] %v974
        %s984 = sand.u32 %s181, 1
        %s985 = scalar_lea.sflag [#allocation3], %s984
        %s986 = sand.u32 %s181, 1
        %s987 = smul.addr %s986, 64
        %s988 = scalar_lea.vmem [#allocation2], %s987
        // Predicated region
        $region49: #{tpu_custom_call.1} parent=47 // pred_check
          %p989 = pneg %p191
        $region50: #{tpu_custom_call.1} parent=47 // pred_check_branch
          %991 = sbr.rel (%p989) target = $region52
        $region51: #{tpu_custom_call.1} parent=47 // pred_region
          %s992 = smul.u32 8, %s21
          %994 = vsyncadd %s985, 0
          %s995 = smul.addr %s992, 8
          %s996 = scalar_lea.hbm %s7, %s995
          %s997 = sshll.u32 %s988, 4
          %s998 = int_to_ptr.vmem [resolvable:$true] %s997
          %s999 = sshll.u32 %s996, 4
          %s1000 = int_to_ptr.hbm [resolvable:$true] %s999
          %1005 = dma.vmem_to_hbm [thread:$0]  %s998, 1024, %s1000, %s985, 128, 128, 8
        $region52: #{tpu_custom_call.1} parent=47 // pred_fallthru
          _
      $region48: #{tpu_custom_call.1} parent=5 // pred_fallthru
        _
      %p1006 = scmp.le.s32.totalorder 2, %s16
      // Predicated region
      $region53: #{tpu_custom_call.1} parent=5 // pred_check
        %p1007 = pneg %p1006
      $region54: #{tpu_custom_call.1} parent=5 // pred_check_branch
        %1009 = sbr.rel (%p1007) target = $region56
      $region55: #{tpu_custom_call.1} parent=5 // pred_region
        %s1010 = ssub.s32 %s16, 2
        // Predicated region
        $region57: #{tpu_custom_call.1} parent=55 // pred_check
          %p1011 = pneg %p197
        $region58: #{tpu_custom_call.1} parent=55 // pred_check_branch
          %1013 = sbr.rel (%p1011) target = $region60
        $region59: #{tpu_custom_call.1} parent=55 // pred_region
          %s1014 = sand.u32 %s182, 1
          %s1015 = scalar_lea.sflag [#allocation3], %s1014
          %s1016 = sand.u32 %s182, 1
          %s1017 = smul.addr %s1016, 64
          %s1018 = scalar_lea.vmem [#allocation2], %s1017
          %1020 = dma.done %s1015, 1024
        $region60: #{tpu_custom_call.1} parent=55 // pred_fallthru
          _
      $region56: #{tpu_custom_call.1} parent=5 // pred_fallthru
        _
    $region6: #{tpu_custom_call.1} parent=1 // loop_footer
      %s20 = sadd.s32 1, %s16
    $region7: #{tpu_custom_call.1} parent=1 // loop_footer_branch
      %15 = sbr.rel target = $region3
    $region8: #{tpu_custom_call.1} parent=1 // loop_exit
      _
    %1021 = vsyncpa [#allocation3], 1
    %s1022 = scalar_lea.sflag [#allocation3], 1
    %1023 = vsyncpa %s1022, 1

</llo_original>
